<compile_context>
chip_gen: v7x
topology: tpu7x:2x2x1
jax: 0.10.0
libtpu: 0.0.40
codegen_flags: <defaults>
</compile_context>

<pallas_src>
import math

import jax
import jax.numpy as jnp
from jax.experimental import pallas as pl
from jax.experimental.pallas import tpu as pltpu


def _gabor_constraint_kernel(x_ref, lo_ref, hi_ref, o_ref):
    # x_ref / lo_ref / hi_ref / o_ref: (1, P) lane-dense, P % 128 == 0.
    x = x_ref[...].astype(jnp.float32)
    o_ref[...] = jnp.clip(x, lo_ref[...], hi_ref[...]).astype(o_ref.dtype)


def gabor_constraint(kernel_data: jax.Array, kernel_size: int) -> jax.Array:
    """Pallas implementation of GaborConstraint.forward."""
    assert kernel_data.ndim == 2 and kernel_data.shape[1] == 2
    n = kernel_data.shape[0]

    sqrt_2ln2 = math.sqrt(2.0 * math.log(2.0))
    mu_lower = 0.0
    mu_upper = math.pi
    sigma_lower = 4.0 * sqrt_2ln2 / math.pi
    sigma_upper = kernel_size * sqrt_2ln2 / math.pi

    # Lane-dense view: (n, 2) row-major -> (1, 2n); pad lanes to a multiple of
    # 128 so the store is an unmasked full-vreg vst.
    flat = 2 * n
    padded = 128 * pl.cdiv(flat, 128)
    pad = padded - flat

    x_flat = jnp.pad(kernel_data.reshape(1, flat), ((0, 0), (0, pad)))

    # Per-lane bounds, built once at trace time (even lane = mu, odd = sigma).
    lower_row = jnp.tile(
        jnp.array([[mu_lower, sigma_lower]], dtype=jnp.float32), (1, n))
    upper_row = jnp.tile(
        jnp.array([[mu_upper, sigma_upper]], dtype=jnp.float32), (1, n))
    lower = jnp.pad(lower_row, ((0, 0), (0, pad)))
    upper = jnp.pad(upper_row, ((0, 0), (0, pad)))

    vmem = pl.BlockSpec(memory_space=pltpu.MemorySpace.VMEM)
    cost = pl.CostEstimate(
        flops=2 * padded,                 # one max + one min per element
        transcendentals=0,
        bytes_accessed=4 * 4 * padded,    # 3 f32 inputs + 1 f32 output
    )

    out_flat = pl.pallas_call(
        _gabor_constraint_kernel,
        out_shape=jax.ShapeDtypeStruct((1, padded), kernel_data.dtype),
        in_specs=[vmem, vmem, vmem],
        out_specs=vmem,
        cost_estimate=cost,
    )(x_flat, lower, upper)

    return out_flat[:, :flat].reshape(n, 2)


def _reference(kernel_data, kernel_size):
    sqrt_2ln2 = math.sqrt(2.0 * math.log(2.0))
    mu = jnp.clip(kernel_data[:, 0], 0.0, math.pi)[:, None]
    sigma = jnp.clip(kernel_data[:, 1],
                     4.0 * sqrt_2ln2 / math.pi,
                     kernel_size * sqrt_2ln2 / math.pi)[:, None]
    return jnp.concatenate([mu, sigma], axis=-1)


if __name__ == "__main__":
    key = jax.random.PRNGKey(0)
    num_filters = 40      # typical LEAF-style filterbank size
    kernel_size = 401     # the module's _kernel_size

    # Deterministic synthetic "kernel_data" parameter: (num_filters, 2).
    # Spread values so both sides of each clamp are exercised.
    k_mu, k_sigma = jax.random.split(key)
    mu_init = jax.random.uniform(k_mu, (num_filters, 1),
                                 minval=-1.0, maxval=math.pi + 1.0)
    sigma_init = jax.random.uniform(k_sigma, (num_filters, 1),
                                    minval=0.0, maxval=600.0)
    kernel_data = jnp.concatenate([mu_init, sigma_init],
                                  axis=-1).astype(jnp.float32)

    out = gabor_constraint(kernel_data, kernel_size)
    out = jax.block_until_ready(out)

    ref = _reference(kernel_data, kernel_size)
    assert out.shape == (num_filters, 2)
    assert jnp.allclose(out, ref, atol=1e-6), "mismatch vs reference"

    print("KERNEL_OK")
</pallas_src>

<mosaic_0001>
module attributes {stable_mosaic.version = 11 : i64} {
  func.func @_gabor_constraint_kernel(%arg0: memref<1x128xf32, #tpu.memory_space<vmem>>, %arg1: memref<1x128xf32, #tpu.memory_space<vmem>>, %arg2: memref<1x128xf32, #tpu.memory_space<vmem>>, %arg3: memref<1x128xf32, #tpu.memory_space<vmem>>) attributes {dimension_semantics = [], scalar_prefetch = 0 : i64, scratch_operands = 0 : i64, tpu.core_type = #tpu.core_type<tc>} {
    %c0 = arith.constant 0 : index
    %c0_0 = arith.constant 0 : index
    %0 = vector.load %arg0[%c0, %c0_0] : memref<1x128xf32, #tpu.memory_space<vmem>>, vector<1x128xf32>
    %c0_1 = arith.constant 0 : index
    %c0_2 = arith.constant 0 : index
    %1 = vector.load %arg1[%c0_1, %c0_2] : memref<1x128xf32, #tpu.memory_space<vmem>>, vector<1x128xf32>
    %c0_3 = arith.constant 0 : index
    %c0_4 = arith.constant 0 : index
    %2 = vector.load %arg2[%c0_3, %c0_4] : memref<1x128xf32, #tpu.memory_space<vmem>>, vector<1x128xf32>
    %3 = arith.maximumf %1, %0 : vector<1x128xf32>
    %4 = arith.minimumf %2, %3 : vector<1x128xf32>
    %c0_5 = arith.constant 0 : index
    %c0_6 = arith.constant 0 : index
    %5 = vector.load %arg3[%c0_5, %c0_6] : memref<1x128xf32, #tpu.memory_space<vmem>>, vector<1x128xf32>
    tpu.vector_store %arg3[%c0_5, %c0_6], %4 {strides = array<i32>} : memref<1x128xf32, #tpu.memory_space<vmem>>, vector<1x128xf32>,
    return
  }
}

</mosaic_0001>

<llo_original>
// kernel: tpu_custom_call.1
$region0: #{tpu_custom_call.1}
  #allocation0 [shape = 'u32[]', space=smem, size = 0x4, offset = 0x4, fixed_abs, tag = 'smem constant byte address 0x4 - core index']
  #allocation1 [shape = 'u32[144,128]{1,0:T(1,128)}', space=vmem, size = 0x12000, scoped, tag = 'internal scratch']
  %s0 = inlined_call_operand.hbm [shape: f32[1,128], index: 0, kind: input, shape index: {}]
  %s1 = inlined_call_operand.vmem [shape: f32[1,128], index: 1, kind: input, shape index: {}]
  %s2 = inlined_call_operand.vmem [shape: f32[1,128], index: 2, kind: input, shape index: {}]
  %s3 = inlined_call_operand.hbm [shape: f32[1,128], index: 3, kind: output, shape index: {}]
  %s4 = sld [smem:[#allocation0]]
  $region26: #{tpu_custom_call.1} parent=0
    _
  %s6 = ssub.s32 1, %s4
  %s7 = scalar_select 0, %s6, %s4
  $region1: #{tpu_custom_call.1} parent=0
    #allocation2 [shape = 'u8[512]{0}', space=vmem, size = 0x400, scoped, tag = 'input window, operand 0, single buffered']
    #allocation3 [shape = 's32[1]{0}', space=sflag, size = 0x4, scoped, tag = 'scoped memory for tpu_custom_call.1']
    #allocation4 [shape = 's32[1]{0}', space=sflag, size = 0x4, scoped, tag = 'scoped memory for tpu_custom_call.1']
    #allocation5 [shape = 'u8[512]{0}', space=vmem, size = 0x400, scoped, tag = 'output window, operand 0, single buffered']
    %8 = vsyncpa [#allocation3], 0
    %9 = vsyncpa [#allocation4], 0
    // Predicated region
    $region2: #{tpu_custom_call.1} parent=1 // pred_check
      _
    $region3: #{tpu_custom_call.1} parent=1 // pred_check_branch
      %11 = sbr.rel (0) target = $region5
    $region4: #{tpu_custom_call.1} parent=1 // pred_region
      %s13 = ssub.s32 16, 16
      %14 = vsyncadd [#allocation3], %s13
      %s16 = sshll.u32 [#allocation2], 4
      %s17 = int_to_ptr.vmem [resolvable:$true] %s16
      %19 = dma.hbm_to_vmem [thread:$0]  %s0, 16, %s17, [#allocation3]
    $region5: #{tpu_custom_call.1} parent=1 // pred_fallthru
      _
    // Predicated region
    $region6: #{tpu_custom_call.1} parent=1 // pred_check
      _
    $region7: #{tpu_custom_call.1} parent=1 // pred_check_branch
      %21 = sbr.rel (0) target = $region9
    $region8: #{tpu_custom_call.1} parent=1 // pred_region
      _
    $region9: #{tpu_custom_call.1} parent=1 // pred_fallthru
      _
    // Predicated region
    $region10: #{tpu_custom_call.1} parent=1 // pred_check
      _
    $region11: #{tpu_custom_call.1} parent=1 // pred_check_branch
      %23 = sbr.rel (0) target = $region13
    $region12: #{tpu_custom_call.1} parent=1 // pred_region
      _
    $region13: #{tpu_custom_call.1} parent=1 // pred_fallthru
      _
    // Predicated region
    $region14: #{tpu_custom_call.1} parent=1 // pred_check
      _
    $region15: #{tpu_custom_call.1} parent=1 // pred_check_branch
      %25 = sbr.rel (0) target = $region17
    $region16: #{tpu_custom_call.1} parent=1 // pred_region
      %26 = dma.done [#allocation3], 16
    $region17: #{tpu_custom_call.1} parent=1 // pred_fallthru
      _
    %v27 = vld [vmem:[#allocation2] sm:$0x1]
    %v28 = vld [vmem:[%s1] sm:$0x1]
    %v29 = vld [vmem:[%s2] sm:$0x1]
    %v30 = vmax.f32 %v28, %v27
    %v31 = vmin.f32 %v29, %v30
    %32 = vst [vmem:[#allocation5] sm:$0x1] %v31
    // Predicated region
    $region18: #{tpu_custom_call.1} parent=1 // pred_check
      _
    $region19: #{tpu_custom_call.1} parent=1 // pred_check_branch
      %34 = sbr.rel (0) target = $region21
    $region20: #{tpu_custom_call.1} parent=1 // pred_region
      %s36 = ssub.s32 16, 16
      %37 = vsyncadd [#allocation4], %s36
      %s39 = sshll.u32 [#allocation5], 4
      %s40 = int_to_ptr.vmem [resolvable:$true] %s39
      %42 = dma.vmem_to_hbm [thread:$0]  %s40, 16, %s3, [#allocation4]
    $region21: #{tpu_custom_call.1} parent=1 // pred_fallthru
      _
    // Predicated region
    $region22: #{tpu_custom_call.1} parent=1 // pred_check
      _
    $region23: #{tpu_custom_call.1} parent=1 // pred_check_branch
      %44 = sbr.rel (0) target = $region25
    $region24: #{tpu_custom_call.1} parent=1 // pred_region
      %45 = dma.done [#allocation4], 16
    $region25: #{tpu_custom_call.1} parent=1 // pred_fallthru
      _
    %46 = vsyncpa [#allocation3], 1
    %47 = vsyncpa [#allocation4], 1

</llo_original>
